<compile_context>
chip_gen: v7x
topology: tpu7x:2x2x1
jax: 0.10.0
libtpu: 0.0.40
codegen_flags: <defaults>
</compile_context>

<pallas_src>
import functools

import jax
import jax.numpy as jnp
from jax.experimental import pallas as pl
from jax.experimental.pallas import tpu as pltpu


def _round_up(x, m):
    return ((x + m - 1) // m) * m


@functools.lru_cache(maxsize=None)
def _tpu_generation():
    """Best-effort TPU generation from device_kind (0 if unknown)."""
    try:
        kind = jax.devices()[0].device_kind.lower()
    except Exception:
        return 0
    for gen in (7, 6, 5, 4, 3, 2):
        if f"v{gen}" in kind or f"{gen}x" in kind:
            return gen
    return 0


def _default_act_dtype():
    # v6e/v7x have bf16 VPU + bf16 EUP (half the tanh/add work); v5e and
    # earlier would emulate bf16 elementwise, so keep f32 activations there.
    return jnp.bfloat16 if _tpu_generation() >= 6 else jnp.float32


def _default_block_batch():
    # Larger tiles amortize the ~0.35us/grid-step overhead on v6e/v7x; keep
    # 512 on v5e to stay clear of f32-intermediate spills (single vst slot).
    return 1024 if _tpu_generation() >= 6 else 512


# ----------------------------------------------------------------------------
# Fused 3-layer MLP kernel: tanh(tanh(x @ W1 + b1) @ W2 + b2) @ W3 + b3
# Matmuls run on the MXU (bf16 operands, f32 accumulation); bias-add / tanh
# run in `act_dtype` (bf16 on v6e/v7x, f32 on v5e).
# ----------------------------------------------------------------------------
def _policy_kernel(x_ref, w1_ref, w2_ref, w3_ref, b_ref, mean_ref,
                   *, h1, h2, out_features, act_dtype, matmul_dtype):
    b1 = b_ref[0:1, 0:h1].astype(act_dtype)
    b2 = b_ref[1:2, 0:h2].astype(act_dtype)
    b3 = b_ref[2:3, 0:out_features]                      # f32, final bias

    x = x_ref[...].astype(matmul_dtype)                  # cast fused in-kernel
    a1 = jnp.dot(x, w1_ref[...], preferred_element_type=jnp.float32)
    h = jnp.tanh(a1.astype(act_dtype) + b1)
    a2 = jnp.dot(h.astype(matmul_dtype), w2_ref[...],
                 preferred_element_type=jnp.float32)
    h = jnp.tanh(a2.astype(act_dtype) + b2)
    a3 = jnp.dot(h.astype(matmul_dtype), w3_ref[...],
                 preferred_element_type=jnp.float32)
    mean_ref[...] = a3 + b3                              # f32 output, 64 B/row


# ----------------------------------------------------------------------------
# One-time parameter packing (run once per parameter update, NOT per call).
# ----------------------------------------------------------------------------
def prepare_params(params, *, matmul_dtype=jnp.bfloat16):
    """Pack GaussianPolicy params for the Pallas kernel (call once per update)."""
    w1 = params["w1"].astype(matmul_dtype)
    w2 = params["w2"].astype(matmul_dtype)
    w3 = params["w3"].astype(matmul_dtype)
    in_features, h1 = w1.shape
    h2 = w2.shape[1]
    out_features = w3.shape[1]

    # Merge all biases into a single (3, bw) f32 operand -> one input DMA.
    bw = _round_up(max(h1, h2, out_features), 128)

    def _row(b):
        b = b.reshape(1, -1).astype(jnp.float32)
        return jnp.pad(b, ((0, 0), (0, bw - b.shape[1])))

    b_all = jnp.concatenate(
        [_row(params["b1"]), _row(params["b2"]), _row(params["b3"])], axis=0)

    # std = exp(log_std) is batch-independent: hoisted out of the kernel and
    # out of the per-call path entirely.
    std = jnp.exp(params["log_std"].astype(jnp.float32))

    return {
        "w1": w1, "w2": w2, "w3": w3, "b_all": b_all, "std": std,
        "dims": (in_features, h1, h2, out_features),
        "matmul_dtype": matmul_dtype,
    }


# ----------------------------------------------------------------------------
# Per-call forward: one Pallas kernel launch, nothing else.
# ----------------------------------------------------------------------------
def gaussian_policy_forward(x, packed, *, block_batch=None, act_dtype=None):
    """GaussianPolicy forward.  `packed` comes from `prepare_params`.

    Returns (mean, std): mean (B, out_features) f32, std (1, out_features) f32
    (std shape matches the PyTorch module, which returns log_std.exp()).
    """
    B, in_features = x.shape
    in_f, h1, h2, out_features = packed["dims"]
    assert in_features == in_f, "x feature dim does not match packed params"
    matmul_dtype = packed["matmul_dtype"]
    if act_dtype is None:
        act_dtype = _default_act_dtype()
    if block_batch is None:
        block_batch = _default_block_batch()

    # Batch tile: >=8 sublanes (or full B if B<8), capped at block_batch.
    if B < 8:
        tb = B
    else:
        tb = min(block_batch, _round_up(B, 8))
        # v7x megacore: give the "parallel" batch axis >=2 grid steps for
        # large batches so both TensorCores get work.
        if B > 256 and pl.cdiv(B, tb) < 2:
            tb = _round_up(pl.cdiv(B, 2), 8)
    grid = (pl.cdiv(B, tb),)   # no batch padding: partial last block is fine,
                               # out-of-range rows are never written back.

    kernel = functools.partial(
        _policy_kernel, h1=h1, h2=h2, out_features=out_features,
        act_dtype=act_dtype, matmul_dtype=matmul_dtype)

    batched = lambda i: (i, 0)    # x / mean tiles walk the batch axis
    resident = lambda i: (0, 0)   # weights / biases stay VMEM-resident

    mean = pl.pallas_call(
        kernel,
        out_shape=jax.ShapeDtypeStruct((B, out_features), jnp.float32),
        grid=grid,
        in_specs=[
            pl.BlockSpec((tb, in_features), batched),
            pl.BlockSpec((in_features, h1), resident),
            pl.BlockSpec((h1, h2), resident),
            pl.BlockSpec((h2, out_features), resident),
            pl.BlockSpec((3, packed["b_all"].shape[1]), resident),
        ],
        out_specs=pl.BlockSpec((tb, out_features), batched),
        compiler_params=pltpu.CompilerParams(
            dimension_semantics=("parallel",)),
    )(x, packed["w1"], packed["w2"], packed["w3"], packed["b_all"])

    return mean, packed["std"]


# ----------------------------------------------------------------------------
# Deterministic parameter construction (mirrors create_mlp(in, n_hidden, out)
# with nonlin='tanh', layer_norm=False, std=1.0).
# ----------------------------------------------------------------------------
def init_params(key, in_features, n_hidden, out_features, std=1.0):
    dims = [in_features] + list(n_hidden) + [out_features]
    params = {}
    keys = jax.random.split(key, len(dims) - 1)
    for i, (d_in, d_out) in enumerate(zip(dims[:-1], dims[1:]), start=1):
        scale = 1.0 / jnp.sqrt(jnp.float32(d_in))
        params[f"w{i}"] = (jax.random.normal(keys[i - 1], (d_in, d_out),
                                             dtype=jnp.float32) * scale)
        params[f"b{i}"] = jnp.full((1, d_out), 0.01 * i, dtype=jnp.float32)
    params["log_std"] = jnp.full((1, out_features), jnp.log(jnp.float32(std)),
                                 dtype=jnp.float32)
    return params


def reference_forward(x, params, *, matmul_dtype=jnp.float32,
                      act_dtype=jnp.float32):
    """Pure-JAX reference with configurable matmul/activation dtypes."""
    dot = lambda a, b: jnp.dot(a.astype(matmul_dtype), b.astype(matmul_dtype),
                               preferred_element_type=jnp.float32)
    h = jnp.tanh(dot(x, params["w1"]).astype(act_dtype)
                 + params["b1"].astype(act_dtype))
    h = jnp.tanh(dot(h, params["w2"]).astype(act_dtype)
                 + params["b2"].astype(act_dtype))
    mean = dot(h, params["w3"]) + params["b3"]
    std = jnp.exp(params["log_std"])
    return mean, std


# TODO(synk): layer_norm=True branch of create_mlp (and nonlin != 'tanh') is
# not implemented; the module defaults (layer_norm=False, nonlin='tanh') are.

if __name__ == "__main__":
    B = 8
    in_features = 32
    n_hidden = [64, 64]
    out_features = 16

    key = jax.random.PRNGKey(0)
    k_x, k_p = jax.random.split(key)
    x = jax.random.normal(k_x, (B, in_features), dtype=jnp.float32)
    params = init_params(k_p, in_features, n_hidden, out_features, std=1.0)

    packed = prepare_params(params)                 # one-time packing
    mean, std = gaussian_policy_forward(x, packed)  # lean per-call path
    jax.block_until_ready((mean, std))

    act_dtype = _default_act_dtype()
    ref_mean_match, ref_std = reference_forward(
        x, params, matmul_dtype=packed["matmul_dtype"], act_dtype=act_dtype)
    ref_mean_f32, _ = reference_forward(x, params)

    assert mean.shape == (B, out_features)
    assert std.shape == (1, out_features)
    assert jnp.allclose(std, ref_std, atol=1e-6, rtol=1e-6)
    # Kernel uses bf16 MXU operands (+ bf16 activations on v6e/v7x); compare
    # against the numerics-matched reference tightly and pure f32 loosely.
    assert jnp.allclose(mean, ref_mean_match, atol=1e-2, rtol=1e-2)
    assert jnp.allclose(mean, ref_mean_f32, atol=8e-2, rtol=8e-2)

    print("KERNEL_OK")
</pallas_src>

<mosaic_0001>
module attributes {stable_mosaic.version = 11 : i64} {
  func.func @_policy_kernel(%arg0: i32, %arg1: memref<8x32xf32, #tpu.memory_space<vmem>>, %arg2: memref<32x64xbf16, #tpu.memory_space<vmem>>, %arg3: memref<64x64xbf16, #tpu.memory_space<vmem>>, %arg4: memref<64x16xbf16, #tpu.memory_space<vmem>>, %arg5: memref<3x128xf32, #tpu.memory_space<vmem>>, %arg6: memref<8x16xf32, #tpu.memory_space<vmem>>) attributes {dimension_semantics = [#tpu.dimension_semantics<parallel>], iteration_bounds = array<i64: 1>, scalar_prefetch = 0 : i64, scratch_operands = 0 : i64, tpu.core_type = #tpu.core_type<tc>, window_params = [{transform_indices = @transform_0, window_bounds = array<i64: 8, 32>}, {pipeline_mode = #tpu.pipeline_mode<synchronous>, transform_indices = @transform_1, window_bounds = array<i64: 32, 64>}, {pipeline_mode = #tpu.pipeline_mode<synchronous>, transform_indices = @transform_2, window_bounds = array<i64: 64, 64>}, {pipeline_mode = #tpu.pipeline_mode<synchronous>, transform_indices = @transform_3, window_bounds = array<i64: 64, 16>}, {pipeline_mode = #tpu.pipeline_mode<synchronous>, transform_indices = @transform_4, window_bounds = array<i64: 3, 128>}, {transform_indices = @transform_5, window_bounds = array<i64: 8, 16>}]} {
    %c0 = arith.constant 0 : index
    %c0_0 = arith.constant 0 : index
    %0 = vector.load %arg5[%c0, %c0_0] : memref<3x128xf32, #tpu.memory_space<vmem>>, vector<1x64xf32>
    %c1 = arith.constant 1 : index
    %c0_1 = arith.constant 0 : index
    %1 = vector.load %arg5[%c1, %c0_1] : memref<3x128xf32, #tpu.memory_space<vmem>>, vector<1x64xf32>
    %c2 = arith.constant 2 : index
    %c0_2 = arith.constant 0 : index
    %2 = vector.load %arg5[%c2, %c0_2] : memref<3x128xf32, #tpu.memory_space<vmem>>, vector<1x16xf32>
    %c0_3 = arith.constant 0 : index
    %c0_4 = arith.constant 0 : index
    %3 = vector.load %arg1[%c0_3, %c0_4] : memref<8x32xf32, #tpu.memory_space<vmem>>, vector<8x32xf32>
    %4 = arith.truncf %3 : vector<8x32xf32> to vector<8x32xbf16>
    %c0_5 = arith.constant 0 : index
    %c0_6 = arith.constant 0 : index
    %5 = vector.load %arg2[%c0_5, %c0_6] : memref<32x64xbf16, #tpu.memory_space<vmem>>, vector<32x64xbf16>
    %cst = arith.constant dense<0.000000e+00> : vector<8x64xf32>
    %6 = tpu.matmul %4, %5, %cst {dimension_numbers = #tpu.dot_dimension_numbers<[1], [0], [0], [1], [0, 0, 1, 1], [], []>} : vector<8x32xbf16>, vector<32x64xbf16>, vector<8x64xf32> -> vector<8x64xf32>
    %7 = vector.broadcast %0 : vector<1x64xf32> to vector<8x64xf32>
    %8 = arith.addf %6, %7 : vector<8x64xf32>
    %9 = math.tanh %8 : vector<8x64xf32>
    %10 = arith.truncf %9 : vector<8x64xf32> to vector<8x64xbf16>
    %c0_7 = arith.constant 0 : index
    %c0_8 = arith.constant 0 : index
    %11 = vector.load %arg3[%c0_7, %c0_8] : memref<64x64xbf16, #tpu.memory_space<vmem>>, vector<64x64xbf16>
    %cst_9 = arith.constant dense<0.000000e+00> : vector<8x64xf32>
    %12 = tpu.matmul %10, %11, %cst_9 {dimension_numbers = #tpu.dot_dimension_numbers<[1], [0], [0], [1], [0, 0, 1, 1], [], []>} : vector<8x64xbf16>, vector<64x64xbf16>, vector<8x64xf32> -> vector<8x64xf32>
    %13 = vector.broadcast %1 : vector<1x64xf32> to vector<8x64xf32>
    %14 = arith.addf %12, %13 : vector<8x64xf32>
    %15 = math.tanh %14 : vector<8x64xf32>
    %16 = arith.truncf %15 : vector<8x64xf32> to vector<8x64xbf16>
    %c0_10 = arith.constant 0 : index
    %c0_11 = arith.constant 0 : index
    %17 = vector.load %arg4[%c0_10, %c0_11] : memref<64x16xbf16, #tpu.memory_space<vmem>>, vector<64x16xbf16>
    %cst_12 = arith.constant dense<0.000000e+00> : vector<8x16xf32>
    %18 = tpu.matmul %16, %17, %cst_12 {dimension_numbers = #tpu.dot_dimension_numbers<[1], [0], [0], [1], [0, 0, 1, 1], [], []>} : vector<8x64xbf16>, vector<64x16xbf16>, vector<8x16xf32> -> vector<8x16xf32>
    %19 = vector.broadcast %2 : vector<1x16xf32> to vector<8x16xf32>
    %20 = arith.addf %18, %19 : vector<8x16xf32>
    %c0_13 = arith.constant 0 : index
    %c0_14 = arith.constant 0 : index
    %21 = vector.load %arg6[%c0_13, %c0_14] : memref<8x16xf32, #tpu.memory_space<vmem>>, vector<8x16xf32>
    tpu.vector_store %arg6[%c0_13, %c0_14], %20 {strides = array<i32>} : memref<8x16xf32, #tpu.memory_space<vmem>>, vector<8x16xf32>,
    return
  }
  func.func @transform_0(%arg0: i32) -> (i32, i32) {
    %c0_i32 = arith.constant 0 : i32
    %c0_i32_0 = arith.constant 0 : i32
    return %arg0, %c0_i32 : i32, i32
  }
  func.func @transform_1(%arg0: i32) -> (i32, i32) {
    %c0_i32 = arith.constant 0 : i32
    %c0_i32_0 = arith.constant 0 : i32
    %c0_i32_1 = arith.constant 0 : i32
    return %c0_i32, %c0_i32_0 : i32, i32
  }
  func.func @transform_2(%arg0: i32) -> (i32, i32) {
    %c0_i32 = arith.constant 0 : i32
    %c0_i32_0 = arith.constant 0 : i32
    %c0_i32_1 = arith.constant 0 : i32
    return %c0_i32, %c0_i32_0 : i32, i32
  }
  func.func @transform_3(%arg0: i32) -> (i32, i32) {
    %c0_i32 = arith.constant 0 : i32
    %c0_i32_0 = arith.constant 0 : i32
    %c0_i32_1 = arith.constant 0 : i32
    return %c0_i32, %c0_i32_0 : i32, i32
  }
  func.func @transform_4(%arg0: i32) -> (i32, i32) {
    %c0_i32 = arith.constant 0 : i32
    %c0_i32_0 = arith.constant 0 : i32
    %c0_i32_1 = arith.constant 0 : i32
    return %c0_i32, %c0_i32_0 : i32, i32
  }
  func.func @transform_5(%arg0: i32) -> (i32, i32) {
    %c0_i32 = arith.constant 0 : i32
    %c0_i32_0 = arith.constant 0 : i32
    return %arg0, %c0_i32 : i32, i32
  }
}

</mosaic_0001>

<llo_original>
// kernel: tpu_custom_call.1
$region0: #{tpu_custom_call.1}
  #allocation0 [shape = 'u32[]', space=smem, size = 0x4, offset = 0x4, fixed_abs, tag = 'smem constant byte address 0x4 - core index']
  #allocation1 [shape = 'u32[144,128]{1,0:T(1,128)}', space=vmem, size = 0x12000, scoped, tag = 'internal scratch']
  %s0 = inlined_call_operand.vmem [shape: f32[8,32], index: 0, kind: input, shape index: {}]
  %s1 = inlined_call_operand.hbm [shape: bf16[32,64], index: 1, kind: input, shape index: {}]
  %s2 = inlined_call_operand.vmem [shape: bf16[64,64], index: 2, kind: input, shape index: {}]
  %s3 = inlined_call_operand.vmem [shape: bf16[64,16], index: 3, kind: input, shape index: {}]
  %s4 = inlined_call_operand.vmem [shape: f32[3,128], index: 4, kind: input, shape index: {}]
  %s5 = inlined_call_operand.hbm [shape: f32[8,16], index: 5, kind: output, shape index: {}]
  %s6 = sld [smem:[#allocation0]]
  $region34: #{tpu_custom_call.1} parent=0
    _
  %s8 = ssub.s32 1, %s6
  %s9 = scalar_select 0, %s8, %s6
  $region1: #{tpu_custom_call.1} parent=0
    #allocation2 [shape = 'u8[8192]{0}', space=vmem, size = 0x2000, scoped, tag = 'input window, operand 1, single buffered']
    #allocation3 [shape = 's32[1]{0}', space=sflag, size = 0x4, scoped, tag = 'scoped memory for tpu_custom_call.1']
    #allocation4 [shape = 's32[1]{0}', space=sflag, size = 0x4, scoped, tag = 'scoped memory for tpu_custom_call.1']
    #allocation5 [shape = 'u8[4096]{0}', space=vmem, size = 0x1000, scoped, tag = 'output window, operand 0, single buffered']
    %10 = vsyncpa [#allocation3], 0
    %11 = vsyncpa [#allocation4], 0
    // Predicated region
    $region2: #{tpu_custom_call.1} parent=1 // pred_check
      _
    $region3: #{tpu_custom_call.1} parent=1 // pred_check_branch
      %13 = sbr.rel (0) target = $region5
    $region4: #{tpu_custom_call.1} parent=1 // pred_region
      _
    $region5: #{tpu_custom_call.1} parent=1 // pred_fallthru
      _
    // Predicated region
    $region6: #{tpu_custom_call.1} parent=1 // pred_check
      _
    $region7: #{tpu_custom_call.1} parent=1 // pred_check_branch
      %15 = sbr.rel (0) target = $region9
    $region8: #{tpu_custom_call.1} parent=1 // pred_region
      %s17 = ssub.s32 256, 256
      %18 = vsyncadd [#allocation3], %s17
      %s19 = sshll.u32 [#allocation2], 4
      %s20 = int_to_ptr.vmem [resolvable:$true] %s19
      %25 = dma.hbm_to_vmem [thread:$0]  %s1, 256, %s20, [#allocation3], 64, 64, 4
    $region9: #{tpu_custom_call.1} parent=1 // pred_fallthru
      _
    // Predicated region
    $region10: #{tpu_custom_call.1} parent=1 // pred_check
      _
    $region11: #{tpu_custom_call.1} parent=1 // pred_check_branch
      %27 = sbr.rel (0) target = $region13
    $region12: #{tpu_custom_call.1} parent=1 // pred_region
      _
    $region13: #{tpu_custom_call.1} parent=1 // pred_fallthru
      _
    // Predicated region
    $region14: #{tpu_custom_call.1} parent=1 // pred_check
      _
    $region15: #{tpu_custom_call.1} parent=1 // pred_check_branch
      %29 = sbr.rel (0) target = $region17
    $region16: #{tpu_custom_call.1} parent=1 // pred_region
      _
    $region17: #{tpu_custom_call.1} parent=1 // pred_fallthru
      _
    // Predicated region
    $region18: #{tpu_custom_call.1} parent=1 // pred_check
      _
    $region19: #{tpu_custom_call.1} parent=1 // pred_check_branch
      %31 = sbr.rel (0) target = $region21
    $region20: #{tpu_custom_call.1} parent=1 // pred_region
      _
    $region21: #{tpu_custom_call.1} parent=1 // pred_fallthru
      _
    // Predicated region
    $region22: #{tpu_custom_call.1} parent=1 // pred_check
      _
    $region23: #{tpu_custom_call.1} parent=1 // pred_check_branch
      %33 = sbr.rel (0) target = $region25
    $region24: #{tpu_custom_call.1} parent=1 // pred_region
      %34 = dma.done [#allocation3], 256
    $region25: #{tpu_custom_call.1} parent=1 // pred_fallthru
      _
    %v36 = vld [vmem:[%s4] sm:$0x1]
    %v37 = vld [vmem:[%s4 + $0x1] sm:$0x1]
    %v38 = vld [vmem:[%s4 + $0x2] sm:$0x1]
    %v39 = vld [vmem:[%s0] sm:$0xff]
    %v40 = vpack.c.bf16 %v39, %v39
    %v41 = vld [vmem:[#allocation2] sm:$0xf]
    %v42 = vld [vmem:[#allocation2 + $0x4] sm:$0xf]
    %v43 = vld [vmem:[#allocation2 + $0x8] sm:$0xf]
    %v44 = vld [vmem:[#allocation2 + $0xc] sm:$0xf]
    %v45 = vlaneseq
    %v46 = vshrl.u32 %v45, 7
    %v47 = vsub.s32 0, %v46
    %v48 = vrot.slane %v36, %v47
    %v53 = vunpack.c.l.b16 %v41
    %v54 = vunpack.c.l.b16 %v42
    %v55 = vunpack.c.l.b16 %v43
    %v56 = vunpack.c.l.b16 %v44
    %v57 = vpack.c.b16 %v54, %v53
    %v58 = vpack.c.b16 %v56, %v55
    %vm61 = vcmask 261120
    %v63 = vsel %vm61, %v40, 0
    %65 = vmatprep.subr.bf16.mxu0 0
    %66 = vmatpush1.bf16.msra.mxu0 %v57
    %67 = vmatprep.subr.bf16.mxu0 0
    %68 = vmatpush1.bf16.msra.mxu0 %v58
    %69 = vmatprep.subr.bf16.mxu0 0
    %70 = vmatpush1.bf16.msra.mxu0 0
    %71 = vmatprep.subr.bf16.mxu0 0
    %72 = vmatpush1.bf16.msra.mxu0 0
    %73 = vmatprep.subr.bf16.mxu0 0
    %74 = vmatpush1.bf16.msra.mxu0 0
    %75 = vmatprep.subr.bf16.mxu0 0
    %76 = vmatpush1.bf16.msra.mxu0 0
    %77 = vmatprep.subr.bf16.mxu0 0
    %78 = vmatpush1.bf16.msra.mxu0 0
    %79 = vmatprep.subr.bf16.mxu0 0
    %80 = vmatpush1.bf16.msra.mxu0 0
    %81 = vmatprep.subr.bf16.mxu0 0
    %82 = vmatpush1.bf16.msra.mxu0 0
    %83 = vmatprep.subr.bf16.mxu0 0
    %84 = vmatpush1.bf16.msra.mxu0 0
    %85 = vmatprep.subr.bf16.mxu0 0
    %86 = vmatpush1.bf16.msra.mxu0 0
    %87 = vmatprep.subr.bf16.mxu0 0
    %88 = vmatpush1.bf16.msra.mxu0 0
    %89 = vmatprep.subr.bf16.mxu0 0
    %90 = vmatpush1.bf16.msra.mxu0 0
    %91 = vmatprep.subr.bf16.mxu0 0
    %92 = vmatpush1.bf16.msra.mxu0 0
    %93 = vmatprep.subr.bf16.mxu0 0
    %94 = vmatpush1.bf16.msra.mxu0 0
    %95 = vmatprep.subr.bf16.mxu0 0
    %96 = vmatpush1.bf16.msra.mxu0 0
    %97 = vmatprep.mubr.bf16.mxu0 0
    %98 = vmatmul.mubr.bf16.gmra.mrb[0].mxu0 %v63
    %v99 = vpop.f32.mrb[0].mxu0
    %v100 = vadd.f32 %v48, %v99
    %v101 = vpop.f32.mrb[0].mxu0
    %v102 = vpop.f32.mrb[0].mxu0
    %v103 = vpop.f32.mrb[0].mxu0
    %104 = vdwg.mxu0
    %v105 = vtanh.pop %v100
    %v106 = vpack.c.bf16 %v105, %v105
    %v107 = vld [vmem:[%s2] sm:$0xf]
    %v108 = vld [vmem:[%s2 + $0x4] sm:$0xf]
    %v109 = vld [vmem:[%s2 + $0x8] sm:$0xf]
    %v110 = vld [vmem:[%s2 + $0xc] sm:$0xf]
    %v111 = vld [vmem:[%s2 + $0x10] sm:$0xf]
    %v112 = vld [vmem:[%s2 + $0x14] sm:$0xf]
    %v113 = vld [vmem:[%s2 + $0x18] sm:$0xf]
    %v114 = vld [vmem:[%s2 + $0x1c] sm:$0xf]
    %v115 = vlaneseq
    %v116 = vshrl.u32 %v115, 7
    %v117 = vsub.s32 0, %v116
    %v118 = vrot.slane %v37, %v117
    %v127 = vunpack.c.l.b16 %v107
    %v128 = vunpack.c.l.b16 %v108
    %v129 = vunpack.c.l.b16 %v109
    %v130 = vunpack.c.l.b16 %v110
    %v131 = vunpack.c.l.b16 %v111
    %v132 = vunpack.c.l.b16 %v112
    %v133 = vunpack.c.l.b16 %v113
    %v134 = vunpack.c.l.b16 %v114
    %v135 = vpack.c.b16 %v128, %v127
    %v136 = vpack.c.b16 %v130, %v129
    %v137 = vpack.c.b16 %v132, %v131
    %v138 = vpack.c.b16 %v134, %v133
    %vm143 = vcmask 523264
    %v145 = vsel %vm143, %v106, 0
    %147 = vmatprep.subr.bf16.mxu0 0
    %148 = vmatpush1.bf16.msra.mxu0 %v135
    %149 = vmatprep.subr.bf16.mxu0 0
    %150 = vmatpush1.bf16.msra.mxu0 %v136
    %151 = vmatprep.subr.bf16.mxu0 0
    %152 = vmatpush1.bf16.msra.mxu0 %v137
    %153 = vmatprep.subr.bf16.mxu0 0
    %154 = vmatpush1.bf16.msra.mxu0 %v138
    %155 = vmatprep.subr.bf16.mxu0 0
    %156 = vmatpush1.bf16.msra.mxu0 0
    %157 = vmatprep.subr.bf16.mxu0 0
    %158 = vmatpush1.bf16.msra.mxu0 0
    %159 = vmatprep.subr.bf16.mxu0 0
    %160 = vmatpush1.bf16.msra.mxu0 0
    %161 = vmatprep.subr.bf16.mxu0 0
    %162 = vmatpush1.bf16.msra.mxu0 0
    %163 = vmatprep.subr.bf16.mxu0 0
    %164 = vmatpush1.bf16.msra.mxu0 0
    %165 = vmatprep.subr.bf16.mxu0 0
    %166 = vmatpush1.bf16.msra.mxu0 0
    %167 = vmatprep.subr.bf16.mxu0 0
    %168 = vmatpush1.bf16.msra.mxu0 0
    %169 = vmatprep.subr.bf16.mxu0 0
    %170 = vmatpush1.bf16.msra.mxu0 0
    %171 = vmatprep.subr.bf16.mxu0 0
    %172 = vmatpush1.bf16.msra.mxu0 0
    %173 = vmatprep.subr.bf16.mxu0 0
    %174 = vmatpush1.bf16.msra.mxu0 0
    %175 = vmatprep.subr.bf16.mxu0 0
    %176 = vmatpush1.bf16.msra.mxu0 0
    %177 = vmatprep.subr.bf16.mxu0 0
    %178 = vmatpush1.bf16.msra.mxu0 0
    %179 = vmatprep.mubr.bf16.mxu0 0
    %180 = vmatmul.mubr.bf16.gmra.mrb[0].mxu0 %v145
    %v181 = vpop.f32.mrb[0].mxu0
    %v182 = vadd.f32 %v118, %v181
    %v183 = vpop.f32.mrb[0].mxu0
    %v184 = vpop.f32.mrb[0].mxu0
    %v185 = vpop.f32.mrb[0].mxu0
    %186 = vdwg.mxu0
    %v187 = vtanh.pop %v182
    %v188 = vpack.c.bf16 %v187, %v187
    %v189 = vld [vmem:[%s3] sm:$0xf]
    %v190 = vld [vmem:[%s3 + $0x4] sm:$0xf]
    %v191 = vld [vmem:[%s3 + $0x8] sm:$0xf]
    %v192 = vld [vmem:[%s3 + $0xc] sm:$0xf]
    %v193 = vld [vmem:[%s3 + $0x10] sm:$0xf]
    %v194 = vld [vmem:[%s3 + $0x14] sm:$0xf]
    %v195 = vld [vmem:[%s3 + $0x18] sm:$0xf]
    %v196 = vld [vmem:[%s3 + $0x1c] sm:$0xf]
    %v197 = vlaneseq
    %v198 = vshrl.u32 %v197, 7
    %v199 = vsub.s32 0, %v198
    %v200 = vrot.slane %v38, %v199
    %v209 = vunpack.c.l.b16 %v189
    %v210 = vunpack.c.l.b16 %v190
    %v211 = vunpack.c.l.b16 %v191
    %v212 = vunpack.c.l.b16 %v192
    %v213 = vunpack.c.l.b16 %v193
    %v214 = vunpack.c.l.b16 %v194
    %v215 = vunpack.c.l.b16 %v195
    %v216 = vunpack.c.l.b16 %v196
    %v217 = vpack.c.b16 %v210, %v209
    %v218 = vpack.c.b16 %v212, %v211
    %v219 = vpack.c.b16 %v214, %v213
    %v220 = vpack.c.b16 %v216, %v215
    %v226 = vsel %vm143, %v188, 0
    %228 = vmatprep.subr.bf16.mxu0 0
    %229 = vmatpush1.bf16.msra.mxu0 %v217
    %230 = vmatprep.subr.bf16.mxu0 0
    %231 = vmatpush1.bf16.msra.mxu0 %v218
    %232 = vmatprep.subr.bf16.mxu0 0
    %233 = vmatpush1.bf16.msra.mxu0 %v219
    %234 = vmatprep.subr.bf16.mxu0 0
    %235 = vmatpush1.bf16.msra.mxu0 %v220
    %236 = vmatprep.subr.bf16.mxu0 0
    %237 = vmatpush1.bf16.msra.mxu0 0
    %238 = vmatprep.subr.bf16.mxu0 0
    %239 = vmatpush1.bf16.msra.mxu0 0
    %240 = vmatprep.subr.bf16.mxu0 0
    %241 = vmatpush1.bf16.msra.mxu0 0
    %242 = vmatprep.subr.bf16.mxu0 0
    %243 = vmatpush1.bf16.msra.mxu0 0
    %244 = vmatprep.subr.bf16.mxu0 0
    %245 = vmatpush1.bf16.msra.mxu0 0
    %246 = vmatprep.subr.bf16.mxu0 0
    %247 = vmatpush1.bf16.msra.mxu0 0
    %248 = vmatprep.subr.bf16.mxu0 0
    %249 = vmatpush1.bf16.msra.mxu0 0
    %250 = vmatprep.subr.bf16.mxu0 0
    %251 = vmatpush1.bf16.msra.mxu0 0
    %252 = vmatprep.subr.bf16.mxu0 0
    %253 = vmatpush1.bf16.msra.mxu0 0
    %254 = vmatprep.subr.bf16.mxu0 0
    %255 = vmatpush1.bf16.msra.mxu0 0
    %256 = vmatprep.subr.bf16.mxu0 0
    %257 = vmatpush1.bf16.msra.mxu0 0
    %258 = vmatprep.subr.bf16.mxu0 0
    %259 = vmatpush1.bf16.msra.mxu0 0
    %260 = vmatprep.mubr.bf16.mxu0 0
    %261 = vmatmul.mubr.bf16.gmra.mrb[0].mxu0 %v226
    %v262 = vpop.f32.mrb[0].mxu0
    %v263 = vadd.f32 %v200, %v262
    %v264 = vpop.f32.mrb[0].mxu0
    %v265 = vpop.f32.mrb[0].mxu0
    %v266 = vpop.f32.mrb[0].mxu0
    %267 = vdwg.mxu0
    %vm268 = vcmask 130048
    %269 = vst.msk [vmem:[#allocation5] sm:$0xff] %vm268, %v263
    // Predicated region
    $region26: #{tpu_custom_call.1} parent=1 // pred_check
      _
    $region27: #{tpu_custom_call.1} parent=1 // pred_check_branch
      %271 = sbr.rel (0) target = $region29
    $region28: #{tpu_custom_call.1} parent=1 // pred_region
      %s273 = ssub.s32 128, 128
      %274 = vsyncadd [#allocation4], %s273
      %s276 = sshll.u32 [#allocation5], 4
      %s277 = int_to_ptr.vmem [resolvable:$true] %s276
      %279 = dma.vmem_to_hbm [thread:$0]  %s277, 128, %s5, [#allocation4]
    $region29: #{tpu_custom_call.1} parent=1 // pred_fallthru
      _
    // Predicated region
    $region30: #{tpu_custom_call.1} parent=1 // pred_check
      _
    $region31: #{tpu_custom_call.1} parent=1 // pred_check_branch
      %281 = sbr.rel (0) target = $region33
    $region32: #{tpu_custom_call.1} parent=1 // pred_region
      %282 = dma.done [#allocation4], 128
    $region33: #{tpu_custom_call.1} parent=1 // pred_fallthru
      _
    %283 = vsyncpa [#allocation3], 1
    %284 = vsyncpa [#allocation4], 1

</llo_original>
